<compile_context>
chip_gen: v7x
topology: tpu7x:2x2x1
jax: 0.10.0
libtpu: 0.0.40
codegen_flags: <defaults>
</compile_context>

<pallas_src>
import jax
import jax.numpy as jnp
from jax.experimental import pallas as pl
from jax.experimental.pallas import tpu as pltpu


# -----------------------------------------------------------------------------
# Kernel: conv1+bn1+relu -> conv2+bn2+relu -> fused conv3 head, decode_scores
# fused via the pre-padded xyz8 tensor (cols 2:5 hold aggregated_vote_xyz).
# -----------------------------------------------------------------------------
def _proposal_head_kernel(xyz8_ref, x_ref,
                          w1_ref, b1_ref, w2_ref, b2_ref, w3_ref, b3_ref,
                          out_ref):
    x = x_ref[...]                                        # (TM, C) bf16 rows
    # conv1 + folded bn1 + relu   (bf16 MXU operands, f32 accumulation)
    h1 = jnp.maximum(
        jnp.dot(x, w1_ref[...], preferred_element_type=jnp.float32)
        + b1_ref[...], 0.0)
    # conv2 + folded bn2 + relu
    h2 = jnp.maximum(
        jnp.dot(h1.astype(x.dtype), w2_ref[...],
                preferred_element_type=jnp.float32)
        + b2_ref[...], 0.0)
    # conv3: [objectness(2) | center-offset(3) | zeros(3)] as one N=8 dot
    h3 = jnp.dot(h2.astype(x.dtype), w3_ref[...],
                 preferred_element_type=jnp.float32) + b3_ref[...]
    # decode_scores fused: center = aggregated_vote_xyz + offset (f32 add)
    out_ref[...] = (h3 + xyz8_ref[...]).astype(out_ref.dtype)


_SINGLE_STEP_ROWS = 512   # below this, one grid step beats splitting


def _pick_row_tile(m):
    """Row tile + grid semantics for the 1-D row grid.

    Small M -> a single grid step (per-step overhead dominates otherwise).
    Large M -> 512/256-row tiles (fills the 256x256 MXU in M on v6e/v7x, still a
    multiple of 128 for v5e), preferring a tile that divides M so no HBM pad is
    needed. Megacore sharding only once per-core tiles amortize step overhead.
    """
    if m <= _SINGLE_STEP_ROWS:
        tm = max(16, ((m + 15) // 16) * 16)               # bf16 sublane packing
        return tm, ("arbitrary",)
    for tm in (512, 256):
        if m % tm == 0:
            break
    else:
        tm = 512
    sem = ("parallel",) if m >= 2048 else ("arbitrary",)
    return tm, sem


def fold_proposal_params(params, eps=1e-5):
    """Fold inference-mode BatchNorm into the 1x1 convs and pre-pack the fused
    conv3 head. Call ONCE at model load; reuse the result every forward so the
    BN-fold / transpose glue stays off the latency-critical path."""
    def fold(w, b, gamma, beta, mean, var):
        scale = gamma / jnp.sqrt(var + eps)
        w_eff = (w * scale[:, None]).T                    # (C_in, C_out)
        b_eff = (b - mean) * scale + beta
        return w_eff.astype(jnp.bfloat16), b_eff[None, :].astype(jnp.float32)

    w1e, b1e = fold(params["w1"], params["b1"], params["g1"], params["be1"],
                    params["m1"], params["v1"])
    w2e, b2e = fold(params["w2"], params["b2"], params["g2"], params["be2"],
                    params["m2"], params["v2"])
    C = params["w1"].shape[1]
    w3 = params["w3"].astype(jnp.float32)                 # (5, C)
    b3 = params["b3"].astype(jnp.float32)                 # (5,)
    # pack [objectness(2) | center(3) | zeros(3)] -> one (C, 8) head
    w3p = jnp.zeros((C, 8), jnp.float32).at[:, :5].set(w3.T).astype(jnp.bfloat16)
    b3p = jnp.zeros((1, 8), jnp.float32).at[:, :5].set(b3[None, :])
    return dict(w1=w1e, b1=b1e, w2=w2e, b2=b2e, w3=w3p, b3=b3p)


def votepose_proposal(xyz, features, folded):
    """Proposal head + decode_scores.

    xyz:      (B, K, 3) aggregated_vote_xyz (output of vote_aggregation)
    features: (B, C, K) aggregated features
    folded:   output of fold_proposal_params()
    """
    B, K, _ = xyz.shape
    C = features.shape[1]
    M = B * K

    # channels-last rows (B*K, C), bf16; allow_input_fusion lets XLA fuse this
    # transpose/convert (and the xyz pad below) into the pallas_call operands.
    x_rows = jnp.transpose(features, (0, 2, 1)).reshape(M, C).astype(jnp.bfloat16)
    # xyz laid onto the fused 8-wide head: cols 2:5 = xyz, zeros elsewhere
    xyz8 = jnp.pad(xyz.reshape(M, 3).astype(jnp.float32), ((0, 0), (2, 3)))

    TM, dim_sem = _pick_row_tile(M)
    n_tiles = pl.cdiv(M, TM)
    M_pad = n_tiles * TM
    if M_pad != M:   # only for ragged M that no 512/256/16 tile divides
        x_rows = jnp.pad(x_rows, ((0, M_pad - M), (0, 0)))
        xyz8 = jnp.pad(xyz8, ((0, M_pad - M), (0, 0)))

    cost = pl.CostEstimate(
        flops=2 * M_pad * C * (2 * C + 8),
        transcendentals=0,
        bytes_accessed=(2 * M_pad * C + 4 * M_pad * 8       # x rows, xyz8
                        + 2 * (2 * C * C + 8 * C)           # bf16 weights
                        + 4 * (2 * C + 8)                   # f32 biases
                        + 4 * M_pad * 8))                    # output

    out = pl.pallas_call(
        _proposal_head_kernel,
        out_shape=jax.ShapeDtypeStruct((M_pad, 8), jnp.float32),
        grid_spec=pltpu.PrefetchScalarGridSpec(
            num_scalar_prefetch=0,
            grid=(n_tiles,),
            in_specs=[
                pl.BlockSpec((TM, 8), lambda i: (i, 0)),     # xyz (padded to 8)
                pl.BlockSpec((TM, C), lambda i: (i, 0)),     # feature rows
                pl.BlockSpec((C, C), lambda i: (0, 0)),      # w1 (VMEM-resident)
                pl.BlockSpec((1, C), lambda i: (0, 0)),
                pl.BlockSpec((C, C), lambda i: (0, 0)),      # w2
                pl.BlockSpec((1, C), lambda i: (0, 0)),
                pl.BlockSpec((C, 8), lambda i: (0, 0)),      # fused conv3 head
                pl.BlockSpec((1, 8), lambda i: (0, 0)),
            ],
            out_specs=pl.BlockSpec((TM, 8), lambda i: (i, 0)),
        ),
        compiler_params=pltpu.CompilerParams(
            dimension_semantics=dim_sem,
            allow_input_fusion=[True, True, False, False,
                                False, False, False, False],
        ),
        cost_estimate=cost,
    )(xyz8, x_rows, folded["w1"], folded["b1"], folded["w2"], folded["b2"],
      folded["w3"], folded["b3"])

    out = out[:M].reshape(B, K, 8)
    return {"objectness_scores": out[:, :, 0:2],
            "center": out[:, :, 2:5],
            "aggregated_vote_xyz": xyz}


def _reference(xyz, features, params, eps=1e-5):
    """Pure-JAX f32 reference with PyTorch (inference-BN) semantics."""
    def bn(x, g, be, m, v):
        return (x - m[None, :, None]) / jnp.sqrt(v[None, :, None] + eps) \
               * g[None, :, None] + be[None, :, None]

    def conv1d(x, w, b):   # x: (B, C_in, K), w: (C_out, C_in)
        return jnp.einsum("oc,bcn->bon", w, x) + b[None, :, None]

    net = jax.nn.relu(bn(conv1d(features, params["w1"], params["b1"]),
                         params["g1"], params["be1"], params["m1"], params["v1"]))
    net = jax.nn.relu(bn(conv1d(net, params["w2"], params["b2"]),
                         params["g2"], params["be2"], params["m2"], params["v2"]))
    net = conv1d(net, params["w3"], params["b3"])            # (B, 5, K)
    net_t = jnp.transpose(net, (0, 2, 1))                    # (B, K, 5)
    return net_t[:, :, 0:2], xyz + net_t[:, :, 2:5]


if __name__ == "__main__":
    B, K, C = 2, 64, 128        # num_proposal=64 per batch, conv head width 128
    DOUT = 2 + 3

    key = jax.random.PRNGKey(0)
    ks = jax.random.split(key, 18)

    xyz = jax.random.normal(ks[0], (B, K, 3), jnp.float32)       # aggregated_vote_xyz
    features = jax.random.normal(ks[1], (B, C, K), jnp.float32)  # aggregated features

    params = {
        "w1": 0.1 * jax.random.normal(ks[2], (C, C), jnp.float32),
        "b1": 0.1 * jax.random.normal(ks[3], (C,), jnp.float32),
        "w2": 0.1 * jax.random.normal(ks[4], (C, C), jnp.float32),
        "b2": 0.1 * jax.random.normal(ks[5], (C,), jnp.float32),
        "w3": 0.1 * jax.random.normal(ks[6], (DOUT, C), jnp.float32),
        "b3": 0.1 * jax.random.normal(ks[7], (DOUT,), jnp.float32),
        "g1": 1.0 + 0.1 * jax.random.uniform(ks[8], (C,), jnp.float32),
        "be1": 0.1 * jax.random.normal(ks[9], (C,), jnp.float32),
        "m1": 0.1 * jax.random.normal(ks[10], (C,), jnp.float32),
        "v1": 1.0 + 0.1 * jax.random.uniform(ks[11], (C,), jnp.float32),
        "g2": 1.0 + 0.1 * jax.random.uniform(ks[12], (C,), jnp.float32),
        "be2": 0.1 * jax.random.normal(ks[13], (C,), jnp.float32),
        "m2": 0.1 * jax.random.normal(ks[14], (C,), jnp.float32),
        "v2": 1.0 + 0.1 * jax.random.uniform(ks[15], (C,), jnp.float32),
    }

    folded = jax.block_until_ready(fold_proposal_params(params))  # once, at load
    end_points = jax.block_until_ready(votepose_proposal(xyz, features, folded))

    ref_obj, ref_center = _reference(xyz, features, params)

    assert end_points["objectness_scores"].shape == (B, K, 2)
    assert end_points["center"].shape == (B, K, 3)
    # bf16 GEMM operands with f32 accumulation vs. an f32 reference -> loosened tol
    assert jnp.allclose(end_points["objectness_scores"], ref_obj, atol=6e-2, rtol=6e-2)
    assert jnp.allclose(end_points["center"], ref_center, atol=6e-2, rtol=6e-2)

    print("KERNEL_OK")
</pallas_src>

<mosaic_0001>
module attributes {stable_mosaic.version = 11 : i64} {
  func.func @_proposal_head_kernel(%arg0: i32, %arg1: memref<128x8xf32, #tpu.memory_space<vmem>>, %arg2: memref<128x128xbf16, #tpu.memory_space<vmem>>, %arg3: memref<128x128xbf16, #tpu.memory_space<vmem>>, %arg4: memref<1x128xf32, #tpu.memory_space<vmem>>, %arg5: memref<128x128xbf16, #tpu.memory_space<vmem>>, %arg6: memref<1x128xf32, #tpu.memory_space<vmem>>, %arg7: memref<128x8xbf16, #tpu.memory_space<vmem>>, %arg8: memref<1x8xf32, #tpu.memory_space<vmem>>, %arg9: memref<128x8xf32, #tpu.memory_space<vmem>>) attributes {dimension_semantics = [#tpu.dimension_semantics<arbitrary>], iteration_bounds = array<i64: 1>, scalar_prefetch = 0 : i64, scratch_operands = 0 : i64, tpu.core_type = #tpu.core_type<tc>, window_params = [{transform_indices = @transform_0, window_bounds = array<i64: 128, 8>}, {transform_indices = @transform_1, window_bounds = array<i64: 128, 128>}, {pipeline_mode = #tpu.pipeline_mode<synchronous>, transform_indices = @transform_2, window_bounds = array<i64: 128, 128>}, {pipeline_mode = #tpu.pipeline_mode<synchronous>, transform_indices = @transform_3, window_bounds = array<i64: 1, 128>}, {pipeline_mode = #tpu.pipeline_mode<synchronous>, transform_indices = @transform_4, window_bounds = array<i64: 128, 128>}, {pipeline_mode = #tpu.pipeline_mode<synchronous>, transform_indices = @transform_5, window_bounds = array<i64: 1, 128>}, {pipeline_mode = #tpu.pipeline_mode<synchronous>, transform_indices = @transform_6, window_bounds = array<i64: 128, 8>}, {pipeline_mode = #tpu.pipeline_mode<synchronous>, transform_indices = @transform_7, window_bounds = array<i64: 1, 8>}, {transform_indices = @transform_8, window_bounds = array<i64: 128, 8>}]} {
    %c0 = arith.constant 0 : index
    %c0_0 = arith.constant 0 : index
    %0 = vector.load %arg2[%c0, %c0_0] : memref<128x128xbf16, #tpu.memory_space<vmem>>, vector<128x128xbf16>
    %c0_1 = arith.constant 0 : index
    %c0_2 = arith.constant 0 : index
    %1 = vector.load %arg3[%c0_1, %c0_2] : memref<128x128xbf16, #tpu.memory_space<vmem>>, vector<128x128xbf16>
    %cst = arith.constant dense<0.000000e+00> : vector<128x128xf32>
    %2 = tpu.matmul %0, %1, %cst {dimension_numbers = #tpu.dot_dimension_numbers<[1], [0], [0], [1], [0, 0, 1, 1], [], []>} : vector<128x128xbf16>, vector<128x128xbf16>, vector<128x128xf32> -> vector<128x128xf32>
    %c0_3 = arith.constant 0 : index
    %c0_4 = arith.constant 0 : index
    %3 = vector.load %arg4[%c0_3, %c0_4] : memref<1x128xf32, #tpu.memory_space<vmem>>, vector<1x128xf32>
    %4 = vector.broadcast %3 : vector<1x128xf32> to vector<128x128xf32>
    %5 = arith.addf %2, %4 : vector<128x128xf32>
    %cst_5 = arith.constant 0.000000e+00 : f32
    %6 = vector.broadcast %cst_5 : f32 to vector<128x128xf32>
    %7 = arith.maximumf %5, %6 : vector<128x128xf32>
    %8 = arith.truncf %7 : vector<128x128xf32> to vector<128x128xbf16>
    %c0_6 = arith.constant 0 : index
    %c0_7 = arith.constant 0 : index
    %9 = vector.load %arg5[%c0_6, %c0_7] : memref<128x128xbf16, #tpu.memory_space<vmem>>, vector<128x128xbf16>
    %cst_8 = arith.constant dense<0.000000e+00> : vector<128x128xf32>
    %10 = tpu.matmul %8, %9, %cst_8 {dimension_numbers = #tpu.dot_dimension_numbers<[1], [0], [0], [1], [0, 0, 1, 1], [], []>} : vector<128x128xbf16>, vector<128x128xbf16>, vector<128x128xf32> -> vector<128x128xf32>
    %c0_9 = arith.constant 0 : index
    %c0_10 = arith.constant 0 : index
    %11 = vector.load %arg6[%c0_9, %c0_10] : memref<1x128xf32, #tpu.memory_space<vmem>>, vector<1x128xf32>
    %12 = vector.broadcast %11 : vector<1x128xf32> to vector<128x128xf32>
    %13 = arith.addf %10, %12 : vector<128x128xf32>
    %cst_11 = arith.constant 0.000000e+00 : f32
    %14 = vector.broadcast %cst_11 : f32 to vector<128x128xf32>
    %15 = arith.maximumf %13, %14 : vector<128x128xf32>
    %16 = arith.truncf %15 : vector<128x128xf32> to vector<128x128xbf16>
    %c0_12 = arith.constant 0 : index
    %c0_13 = arith.constant 0 : index
    %17 = vector.load %arg7[%c0_12, %c0_13] : memref<128x8xbf16, #tpu.memory_space<vmem>>, vector<128x8xbf16>
    %cst_14 = arith.constant dense<0.000000e+00> : vector<128x8xf32>
    %18 = tpu.matmul %16, %17, %cst_14 {dimension_numbers = #tpu.dot_dimension_numbers<[1], [0], [0], [1], [0, 0, 1, 1], [], []>} : vector<128x128xbf16>, vector<128x8xbf16>, vector<128x8xf32> -> vector<128x8xf32>
    %c0_15 = arith.constant 0 : index
    %c0_16 = arith.constant 0 : index
    %19 = vector.load %arg8[%c0_15, %c0_16] : memref<1x8xf32, #tpu.memory_space<vmem>>, vector<1x8xf32>
    %20 = vector.broadcast %19 : vector<1x8xf32> to vector<128x8xf32>
    %21 = arith.addf %18, %20 : vector<128x8xf32>
    %c0_17 = arith.constant 0 : index
    %c0_18 = arith.constant 0 : index
    %22 = vector.load %arg1[%c0_17, %c0_18] : memref<128x8xf32, #tpu.memory_space<vmem>>, vector<128x8xf32>
    %23 = arith.addf %21, %22 : vector<128x8xf32>
    %c0_19 = arith.constant 0 : index
    %c0_20 = arith.constant 0 : index
    %24 = vector.load %arg9[%c0_19, %c0_20] : memref<128x8xf32, #tpu.memory_space<vmem>>, vector<128x8xf32>
    tpu.vector_store %arg9[%c0_19, %c0_20], %23 {strides = array<i32>} : memref<128x8xf32, #tpu.memory_space<vmem>>, vector<128x8xf32>,
    return
  }
  func.func @transform_0(%arg0: i32) -> (i32, i32) {
    %c0_i32 = arith.constant 0 : i32
    %c0_i32_0 = arith.constant 0 : i32
    return %arg0, %c0_i32 : i32, i32
  }
  func.func @transform_1(%arg0: i32) -> (i32, i32) {
    %c0_i32 = arith.constant 0 : i32
    %c0_i32_0 = arith.constant 0 : i32
    return %arg0, %c0_i32 : i32, i32
  }
  func.func @transform_2(%arg0: i32) -> (i32, i32) {
    %c0_i32 = arith.constant 0 : i32
    %c0_i32_0 = arith.constant 0 : i32
    %c0_i32_1 = arith.constant 0 : i32
    return %c0_i32, %c0_i32_0 : i32, i32
  }
  func.func @transform_3(%arg0: i32) -> (i32, i32) {
    %c0_i32 = arith.constant 0 : i32
    %c0_i32_0 = arith.constant 0 : i32
    %c0_i32_1 = arith.constant 0 : i32
    return %c0_i32, %c0_i32_0 : i32, i32
  }
  func.func @transform_4(%arg0: i32) -> (i32, i32) {
    %c0_i32 = arith.constant 0 : i32
    %c0_i32_0 = arith.constant 0 : i32
    %c0_i32_1 = arith.constant 0 : i32
    return %c0_i32, %c0_i32_0 : i32, i32
  }
  func.func @transform_5(%arg0: i32) -> (i32, i32) {
    %c0_i32 = arith.constant 0 : i32
    %c0_i32_0 = arith.constant 0 : i32
    %c0_i32_1 = arith.constant 0 : i32
    return %c0_i32, %c0_i32_0 : i32, i32
  }
  func.func @transform_6(%arg0: i32) -> (i32, i32) {
    %c0_i32 = arith.constant 0 : i32
    %c0_i32_0 = arith.constant 0 : i32
    %c0_i32_1 = arith.constant 0 : i32
    return %c0_i32, %c0_i32_0 : i32, i32
  }
  func.func @transform_7(%arg0: i32) -> (i32, i32) {
    %c0_i32 = arith.constant 0 : i32
    %c0_i32_0 = arith.constant 0 : i32
    %c0_i32_1 = arith.constant 0 : i32
    return %c0_i32, %c0_i32_0 : i32, i32
  }
  func.func @transform_8(%arg0: i32) -> (i32, i32) {
    %c0_i32 = arith.constant 0 : i32
    %c0_i32_0 = arith.constant 0 : i32
    return %arg0, %c0_i32 : i32, i32
  }
}

</mosaic_0001>

<llo_original>
// kernel: tpu_custom_call.1
$region0: #{tpu_custom_call.1}
  #allocation0 [shape = 'u32[]', space=smem, size = 0x4, offset = 0x4, fixed_abs, tag = 'smem constant byte address 0x4 - core index']
  #allocation1 [shape = 'u32[144,128]{1,0:T(1,128)}', space=vmem, size = 0x12000, scoped, tag = 'internal scratch']
  %s0 = inlined_call_operand.vmem [shape: f32[128,8], index: 0, kind: input, shape index: {}]
  %s1 = inlined_call_operand.vmem [shape: bf16[128,128], index: 1, kind: input, shape index: {}]
  %s2 = inlined_call_operand.vmem [shape: bf16[128,128], index: 2, kind: input, shape index: {}]
  %s3 = inlined_call_operand.vmem [shape: f32[1,128], index: 3, kind: input, shape index: {}]
  %s4 = inlined_call_operand.vmem [shape: bf16[128,128], index: 4, kind: input, shape index: {}]
  %s5 = inlined_call_operand.vmem [shape: f32[1,128], index: 5, kind: input, shape index: {}]
  %s6 = inlined_call_operand.vmem [shape: bf16[128,8], index: 6, kind: input, shape index: {}]
  %s7 = inlined_call_operand.vmem [shape: f32[1,8], index: 7, kind: input, shape index: {}]
  %s8 = inlined_call_operand.vmem [shape: f32[128,8], index: 8, kind: output, shape index: {}]
  %s9 = sld [smem:[#allocation0]]
  $region42: #{tpu_custom_call.1} parent=0
    _
  %s11 = ssub.s32 1, %s9
  %s12 = scalar_select 0, %s11, %s9
  // Predicated region
  $region2: #{tpu_custom_call.1} parent=0 // pred_check
    _
  $region3: #{tpu_custom_call.1} parent=0 // pred_check_branch
    %14 = sbr.rel (0) target = $region5
  $region4: #{tpu_custom_call.1} parent=0 // pred_region
    _
  $region5: #{tpu_custom_call.1} parent=0 // pred_fallthru
    _
  // Predicated region
  $region6: #{tpu_custom_call.1} parent=0 // pred_check
    _
  $region7: #{tpu_custom_call.1} parent=0 // pred_check_branch
    %16 = sbr.rel (0) target = $region9
  $region8: #{tpu_custom_call.1} parent=0 // pred_region
    _
  $region9: #{tpu_custom_call.1} parent=0 // pred_fallthru
    _
  // Predicated region
  $region10: #{tpu_custom_call.1} parent=0 // pred_check
    _
  $region11: #{tpu_custom_call.1} parent=0 // pred_check_branch
    %18 = sbr.rel (0) target = $region13
  $region12: #{tpu_custom_call.1} parent=0 // pred_region
    _
  $region13: #{tpu_custom_call.1} parent=0 // pred_fallthru
    _
  // Predicated region
  $region14: #{tpu_custom_call.1} parent=0 // pred_check
    _
  $region15: #{tpu_custom_call.1} parent=0 // pred_check_branch
    %20 = sbr.rel (0) target = $region17
  $region16: #{tpu_custom_call.1} parent=0 // pred_region
    _
  $region17: #{tpu_custom_call.1} parent=0 // pred_fallthru
    _
  // Predicated region
  $region18: #{tpu_custom_call.1} parent=0 // pred_check
    _
  $region19: #{tpu_custom_call.1} parent=0 // pred_check_branch
    %22 = sbr.rel (0) target = $region21
  $region20: #{tpu_custom_call.1} parent=0 // pred_region
    _
  $region21: #{tpu_custom_call.1} parent=0 // pred_fallthru
    _
  // Predicated region
  $region22: #{tpu_custom_call.1} parent=0 // pred_check
    _
  $region23: #{tpu_custom_call.1} parent=0 // pred_check_branch
    %24 = sbr.rel (0) target = $region25
  $region24: #{tpu_custom_call.1} parent=0 // pred_region
    _
  $region25: #{tpu_custom_call.1} parent=0 // pred_fallthru
    _
  // Predicated region
  $region26: #{tpu_custom_call.1} parent=0 // pred_check
    _
  $region27: #{tpu_custom_call.1} parent=0 // pred_check_branch
    %26 = sbr.rel (0) target = $region29
  $region28: #{tpu_custom_call.1} parent=0 // pred_region
    _
  $region29: #{tpu_custom_call.1} parent=0 // pred_fallthru
    _
  // Predicated region
  $region30: #{tpu_custom_call.1} parent=0 // pred_check
    _
  $region31: #{tpu_custom_call.1} parent=0 // pred_check_branch
    %28 = sbr.rel (0) target = $region33
  $region32: #{tpu_custom_call.1} parent=0 // pred_region
    _
  $region33: #{tpu_custom_call.1} parent=0 // pred_fallthru
    _
  %v30 = vld [vmem:[%s1] sm:$0xf]
  %v31 = vld [vmem:[%s1 + $0x4] sm:$0xf]
  %v32 = vld [vmem:[%s1 + $0x8] sm:$0xf]
  %v33 = vld [vmem:[%s1 + $0xc] sm:$0xf]
  %v34 = vld [vmem:[%s1 + $0x10] sm:$0xf]
  %v35 = vld [vmem:[%s1 + $0x14] sm:$0xf]
  %v36 = vld [vmem:[%s1 + $0x18] sm:$0xf]
  %v37 = vld [vmem:[%s1 + $0x1c] sm:$0xf]
  %v38 = vld [vmem:[%s1 + $0x20] sm:$0xf]
  %v39 = vld [vmem:[%s1 + $0x24] sm:$0xf]
  %v40 = vld [vmem:[%s1 + $0x28] sm:$0xf]
  %v41 = vld [vmem:[%s1 + $0x2c] sm:$0xf]
  %v42 = vld [vmem:[%s1 + $0x30] sm:$0xf]
  %v43 = vld [vmem:[%s1 + $0x34] sm:$0xf]
  %v44 = vld [vmem:[%s1 + $0x38] sm:$0xf]
  %v45 = vld [vmem:[%s1 + $0x3c] sm:$0xf]
  %v46 = vld [vmem:[%s2] sm:$0xf]
  %v47 = vld [vmem:[%s2 + $0x4] sm:$0xf]
  %v48 = vld [vmem:[%s2 + $0x8] sm:$0xf]
  %v49 = vld [vmem:[%s2 + $0xc] sm:$0xf]
  %v50 = vld [vmem:[%s2 + $0x10] sm:$0xf]
  %v51 = vld [vmem:[%s2 + $0x14] sm:$0xf]
  %v52 = vld [vmem:[%s2 + $0x18] sm:$0xf]
  %v53 = vld [vmem:[%s2 + $0x1c] sm:$0xf]
  %v54 = vld [vmem:[%s2 + $0x20] sm:$0xf]
  %v55 = vld [vmem:[%s2 + $0x24] sm:$0xf]
  %v56 = vld [vmem:[%s2 + $0x28] sm:$0xf]
  %v57 = vld [vmem:[%s2 + $0x2c] sm:$0xf]
  %v58 = vld [vmem:[%s2 + $0x30] sm:$0xf]
  %v59 = vld [vmem:[%s2 + $0x34] sm:$0xf]
  %v60 = vld [vmem:[%s2 + $0x38] sm:$0xf]
  %v61 = vld [vmem:[%s2 + $0x3c] sm:$0xf]
  %v62 = vld [vmem:[%s3] sm:$0x1]
  %v64 = vlaneseq
  %v65 = vshrl.u32 %v64, 7
  %v66 = vsub.s32 0, %v65
  %v67 = vrot.slane %v62, %v66
  %v85 = vunpack.c.l.b16 %v30
  %v86 = vunpack.c.l.b16 %v31
  %v87 = vunpack.c.l.b16 %v32
  %v88 = vunpack.c.l.b16 %v33
  %v89 = vunpack.c.l.b16 %v34
  %v90 = vunpack.c.l.b16 %v35
  %v91 = vunpack.c.l.b16 %v36
  %v92 = vunpack.c.l.b16 %v37
  %v93 = vunpack.c.l.b16 %v38
  %v94 = vunpack.c.l.b16 %v39
  %v95 = vunpack.c.l.b16 %v40
  %v96 = vunpack.c.l.b16 %v41
  %v97 = vunpack.c.l.b16 %v42
  %v98 = vunpack.c.l.b16 %v43
  %v99 = vunpack.c.l.b16 %v44
  %v100 = vunpack.c.l.b16 %v45
  %v101 = vpack.c.b16 %v86, %v85
  %v102 = vpack.c.b16 %v88, %v87
  %v103 = vpack.c.b16 %v90, %v89
  %v104 = vpack.c.b16 %v92, %v91
  %v105 = vpack.c.b16 %v94, %v93
  %v106 = vpack.c.b16 %v96, %v95
  %v107 = vpack.c.b16 %v98, %v97
  %v108 = vpack.c.b16 %v100, %v99
  %v133 = vunpack.c.l.b16 %v46
  %v134 = vunpack.c.l.b16 %v47
  %v135 = vunpack.c.l.b16 %v48
  %v136 = vunpack.c.l.b16 %v49
  %v137 = vunpack.c.l.b16 %v50
  %v138 = vunpack.c.l.b16 %v51
  %v139 = vunpack.c.l.b16 %v52
  %v140 = vunpack.c.l.b16 %v53
  %v141 = vunpack.c.l.b16 %v54
  %v142 = vunpack.c.l.b16 %v55
  %v143 = vunpack.c.l.b16 %v56
  %v144 = vunpack.c.l.b16 %v57
  %v145 = vunpack.c.l.b16 %v58
  %v146 = vunpack.c.l.b16 %v59
  %v147 = vunpack.c.l.b16 %v60
  %v148 = vunpack.c.l.b16 %v61
  %v149 = vpack.c.b16 %v134, %v133
  %v150 = vpack.c.b16 %v136, %v135
  %v151 = vpack.c.b16 %v138, %v137
  %v152 = vpack.c.b16 %v140, %v139
  %v153 = vpack.c.b16 %v142, %v141
  %v154 = vpack.c.b16 %v144, %v143
  %v155 = vpack.c.b16 %v146, %v145
  %v156 = vpack.c.b16 %v148, %v147
  %165 = vmatprep.subr.bf16.mxu0 0
  %166 = vmatpush1.bf16.msra.mxu0 %v149
  %167 = vmatprep.subr.bf16.mxu0 0
  %168 = vmatpush1.bf16.msra.mxu0 %v150
  %169 = vmatprep.subr.bf16.mxu0 0
  %170 = vmatpush1.bf16.msra.mxu0 %v151
  %171 = vmatprep.subr.bf16.mxu0 0
  %172 = vmatpush1.bf16.msra.mxu0 %v152
  %173 = vmatprep.subr.bf16.mxu0 0
  %174 = vmatpush1.bf16.msra.mxu0 %v153
  %175 = vmatprep.subr.bf16.mxu0 0
  %176 = vmatpush1.bf16.msra.mxu0 %v154
  %177 = vmatprep.subr.bf16.mxu0 0
  %178 = vmatpush1.bf16.msra.mxu0 %v155
  %179 = vmatprep.subr.bf16.mxu0 0
  %180 = vmatpush1.bf16.msra.mxu0 %v156
  %181 = vmatprep.subr.bf16.mxu0 0
  %182 = vmatpush1.bf16.msra.mxu0 0
  %183 = vmatprep.subr.bf16.mxu0 0
  %184 = vmatpush1.bf16.msra.mxu0 0
  %185 = vmatprep.subr.bf16.mxu0 0
  %186 = vmatpush1.bf16.msra.mxu0 0
  %187 = vmatprep.subr.bf16.mxu0 0
  %188 = vmatpush1.bf16.msra.mxu0 0
  %189 = vmatprep.subr.bf16.mxu0 0
  %190 = vmatpush1.bf16.msra.mxu0 0
  %191 = vmatprep.subr.bf16.mxu0 0
  %192 = vmatpush1.bf16.msra.mxu0 0
  %193 = vmatprep.subr.bf16.mxu0 0
  %194 = vmatpush1.bf16.msra.mxu0 0
  %195 = vmatprep.subr.bf16.mxu0 0
  %196 = vmatpush1.bf16.msra.mxu0 0
  %197 = vmatprep.mubr.bf16.mxu0 0
  %198 = vmatmul.mubr.bf16.gmra.mrb[0].mxu0 %v101
  %v199 = vpop.f32.mrb[0].mxu0
  %v200 = vadd.f32 %v67, %v199
  %v201 = vpop.f32.mrb[0].mxu0
  %v202 = vpop.f32.mrb[0].mxu0
  %v203 = vadd.f32 %v67, %v202
  %v204 = vpop.f32.mrb[0].mxu0
  %205 = vmatprep.mubr.bf16.mxu0 0
  %206 = vmatmul.mubr.bf16.gmra.mrb[0].mxu0 %v102
  %v207 = vpop.f32.mrb[0].mxu0
  %v208 = vadd.f32 %v67, %v207
  %v209 = vpop.f32.mrb[0].mxu0
  %v210 = vpop.f32.mrb[0].mxu0
  %v211 = vadd.f32 %v67, %v210
  %v212 = vpop.f32.mrb[0].mxu0
  %213 = vmatprep.mubr.bf16.mxu0 0
  %214 = vmatmul.mubr.bf16.gmra.mrb[0].mxu0 %v103
  %v215 = vpop.f32.mrb[0].mxu0
  %v216 = vadd.f32 %v67, %v215
  %v217 = vpop.f32.mrb[0].mxu0
  %v218 = vpop.f32.mrb[0].mxu0
  %v219 = vadd.f32 %v67, %v218
  %v220 = vpop.f32.mrb[0].mxu0
  %221 = vmatprep.mubr.bf16.mxu0 0
  %222 = vmatmul.mubr.bf16.gmra.mrb[0].mxu0 %v104
  %v223 = vpop.f32.mrb[0].mxu0
  %v224 = vadd.f32 %v67, %v223
  %v225 = vpop.f32.mrb[0].mxu0
  %v226 = vpop.f32.mrb[0].mxu0
  %v227 = vadd.f32 %v67, %v226
  %v228 = vpop.f32.mrb[0].mxu0
  %229 = vmatprep.mubr.bf16.mxu0 0
  %230 = vmatmul.mubr.bf16.gmra.mrb[0].mxu0 %v105
  %v231 = vpop.f32.mrb[0].mxu0
  %v232 = vadd.f32 %v67, %v231
  %v233 = vpop.f32.mrb[0].mxu0
  %v234 = vpop.f32.mrb[0].mxu0
  %v235 = vadd.f32 %v67, %v234
  %v236 = vpop.f32.mrb[0].mxu0
  %237 = vmatprep.mubr.bf16.mxu0 0
  %238 = vmatmul.mubr.bf16.gmra.mrb[0].mxu0 %v106
  %v239 = vpop.f32.mrb[0].mxu0
  %v240 = vadd.f32 %v67, %v239
  %v241 = vpop.f32.mrb[0].mxu0
  %v242 = vpop.f32.mrb[0].mxu0
  %v243 = vadd.f32 %v67, %v242
  %v244 = vpop.f32.mrb[0].mxu0
  %245 = vmatprep.mubr.bf16.mxu0 0
  %246 = vmatmul.mubr.bf16.gmra.mrb[0].mxu0 %v107
  %v247 = vpop.f32.mrb[0].mxu0
  %v248 = vadd.f32 %v67, %v247
  %v249 = vpop.f32.mrb[0].mxu0
  %v250 = vpop.f32.mrb[0].mxu0
  %v251 = vadd.f32 %v67, %v250
  %v252 = vpop.f32.mrb[0].mxu0
  %253 = vmatprep.mubr.bf16.mxu0 0
  %254 = vmatmul.mubr.bf16.gmra.mrb[0].mxu0 %v108
  %v255 = vpop.f32.mrb[0].mxu0
  %v256 = vadd.f32 %v67, %v255
  %v257 = vpop.f32.mrb[0].mxu0
  %v258 = vpop.f32.mrb[0].mxu0
  %v259 = vadd.f32 %v67, %v258
  %v260 = vpop.f32.mrb[0].mxu0
  %261 = vdwg.mxu0
  %v262 = vmax.f32 %v200, 0.0
  %v263 = vmax.f32 %v203, 0.0
  %v264 = vmax.f32 %v208, 0.0
  %v265 = vmax.f32 %v211, 0.0
  %v266 = vmax.f32 %v216, 0.0
  %v267 = vmax.f32 %v219, 0.0
  %v268 = vmax.f32 %v224, 0.0
  %v269 = vmax.f32 %v227, 0.0
  %v270 = vmax.f32 %v232, 0.0
  %v271 = vmax.f32 %v235, 0.0
  %v272 = vmax.f32 %v240, 0.0
  %v273 = vmax.f32 %v243, 0.0
  %v274 = vmax.f32 %v248, 0.0
  %v275 = vmax.f32 %v251, 0.0
  %v276 = vmax.f32 %v256, 0.0
  %v277 = vmax.f32 %v259, 0.0
  %v278 = vpack.c.bf16 %v263, %v262
  %v279 = vpack.c.bf16 %v265, %v264
  %v280 = vpack.c.bf16 %v267, %v266
  %v281 = vpack.c.bf16 %v269, %v268
  %v282 = vpack.c.bf16 %v271, %v270
  %v283 = vpack.c.bf16 %v273, %v272
  %v284 = vpack.c.bf16 %v275, %v274
  %v285 = vpack.c.bf16 %v277, %v276
  %v286 = vld [vmem:[%s4] sm:$0xf]
  %v287 = vld [vmem:[%s4 + $0x4] sm:$0xf]
  %v288 = vld [vmem:[%s4 + $0x8] sm:$0xf]
  %v289 = vld [vmem:[%s4 + $0xc] sm:$0xf]
  %v290 = vld [vmem:[%s4 + $0x10] sm:$0xf]
  %v291 = vld [vmem:[%s4 + $0x14] sm:$0xf]
  %v292 = vld [vmem:[%s4 + $0x18] sm:$0xf]
  %v293 = vld [vmem:[%s4 + $0x1c] sm:$0xf]
  %v294 = vld [vmem:[%s4 + $0x20] sm:$0xf]
  %v295 = vld [vmem:[%s4 + $0x24] sm:$0xf]
  %v296 = vld [vmem:[%s4 + $0x28] sm:$0xf]
  %v297 = vld [vmem:[%s4 + $0x2c] sm:$0xf]
  %v298 = vld [vmem:[%s4 + $0x30] sm:$0xf]
  %v299 = vld [vmem:[%s4 + $0x34] sm:$0xf]
  %v300 = vld [vmem:[%s4 + $0x38] sm:$0xf]
  %v301 = vld [vmem:[%s4 + $0x3c] sm:$0xf]
  %v302 = vld [vmem:[%s5] sm:$0x1]
  %v304 = vlaneseq
  %v305 = vshrl.u32 %v304, 7
  %v306 = vsub.s32 0, %v305
  %v307 = vrot.slane %v302, %v306
  %v325 = vunpack.c.l.b16 %v286
  %v326 = vunpack.c.l.b16 %v287
  %v327 = vunpack.c.l.b16 %v288
  %v328 = vunpack.c.l.b16 %v289
  %v329 = vunpack.c.l.b16 %v290
  %v330 = vunpack.c.l.b16 %v291
  %v331 = vunpack.c.l.b16 %v292
  %v332 = vunpack.c.l.b16 %v293
  %v333 = vunpack.c.l.b16 %v294
  %v334 = vunpack.c.l.b16 %v295
  %v335 = vunpack.c.l.b16 %v296
  %v336 = vunpack.c.l.b16 %v297
  %v337 = vunpack.c.l.b16 %v298
  %v338 = vunpack.c.l.b16 %v299
  %v339 = vunpack.c.l.b16 %v300
  %v340 = vunpack.c.l.b16 %v301
  %v341 = vpack.c.b16 %v326, %v325
  %v342 = vpack.c.b16 %v328, %v327
  %v343 = vpack.c.b16 %v330, %v329
  %v344 = vpack.c.b16 %v332, %v331
  %v345 = vpack.c.b16 %v334, %v333
  %v346 = vpack.c.b16 %v336, %v335
  %v347 = vpack.c.b16 %v338, %v337
  %v348 = vpack.c.b16 %v340, %v339
  %357 = vmatprep.subr.bf16.mxu0 0
  %358 = vmatpush1.bf16.msra.mxu0 %v341
  %359 = vmatprep.subr.bf16.mxu0 0
  %360 = vmatpush1.bf16.msra.mxu0 %v342
  %361 = vmatprep.subr.bf16.mxu0 0
  %362 = vmatpush1.bf16.msra.mxu0 %v343
  %363 = vmatprep.subr.bf16.mxu0 0
  %364 = vmatpush1.bf16.msra.mxu0 %v344
  %365 = vmatprep.subr.bf16.mxu0 0
  %366 = vmatpush1.bf16.msra.mxu0 %v345
  %367 = vmatprep.subr.bf16.mxu0 0
  %368 = vmatpush1.bf16.msra.mxu0 %v346
  %369 = vmatprep.subr.bf16.mxu0 0
  %370 = vmatpush1.bf16.msra.mxu0 %v347
  %371 = vmatprep.subr.bf16.mxu0 0
  %372 = vmatpush1.bf16.msra.mxu0 %v348
  %373 = vmatprep.subr.bf16.mxu0 0
  %374 = vmatpush1.bf16.msra.mxu0 0
  %375 = vmatprep.subr.bf16.mxu0 0
  %376 = vmatpush1.bf16.msra.mxu0 0
  %377 = vmatprep.subr.bf16.mxu0 0
  %378 = vmatpush1.bf16.msra.mxu0 0
  %379 = vmatprep.subr.bf16.mxu0 0
  %380 = vmatpush1.bf16.msra.mxu0 0
  %381 = vmatprep.subr.bf16.mxu0 0
  %382 = vmatpush1.bf16.msra.mxu0 0
  %383 = vmatprep.subr.bf16.mxu0 0
  %384 = vmatpush1.bf16.msra.mxu0 0
  %385 = vmatprep.subr.bf16.mxu0 0
  %386 = vmatpush1.bf16.msra.mxu0 0
  %387 = vmatprep.subr.bf16.mxu0 0
  %388 = vmatpush1.bf16.msra.mxu0 0
  %389 = vmatprep.mubr.bf16.mxu0 0
  %390 = vmatmul.mubr.bf16.gmra.mrb[0].mxu0 %v278
  %v391 = vpop.f32.mrb[0].mxu0
  %v392 = vadd.f32 %v307, %v391
  %v393 = vpop.f32.mrb[0].mxu0
  %v394 = vpop.f32.mrb[0].mxu0
  %v395 = vadd.f32 %v307, %v394
  %v396 = vpop.f32.mrb[0].mxu0
  %397 = vmatprep.mubr.bf16.mxu0 0
  %398 = vmatmul.mubr.bf16.gmra.mrb[0].mxu0 %v279
  %v399 = vpop.f32.mrb[0].mxu0
  %v400 = vadd.f32 %v307, %v399
  %v401 = vpop.f32.mrb[0].mxu0
  %v402 = vpop.f32.mrb[0].mxu0
  %v403 = vadd.f32 %v307, %v402
  %v404 = vpop.f32.mrb[0].mxu0
  %405 = vmatprep.mubr.bf16.mxu0 0
  %406 = vmatmul.mubr.bf16.gmra.mrb[0].mxu0 %v280
  %v407 = vpop.f32.mrb[0].mxu0
  %v408 = vadd.f32 %v307, %v407
  %v409 = vpop.f32.mrb[0].mxu0
  %v410 = vpop.f32.mrb[0].mxu0
  %v411 = vadd.f32 %v307, %v410
  %v412 = vpop.f32.mrb[0].mxu0
  %413 = vmatprep.mubr.bf16.mxu0 0
  %414 = vmatmul.mubr.bf16.gmra.mrb[0].mxu0 %v281
  %v415 = vpop.f32.mrb[0].mxu0
  %v416 = vadd.f32 %v307, %v415
  %v417 = vpop.f32.mrb[0].mxu0
  %v418 = vpop.f32.mrb[0].mxu0
  %v419 = vadd.f32 %v307, %v418
  %v420 = vpop.f32.mrb[0].mxu0
  %421 = vmatprep.mubr.bf16.mxu0 0
  %422 = vmatmul.mubr.bf16.gmra.mrb[0].mxu0 %v282
  %v423 = vpop.f32.mrb[0].mxu0
  %v424 = vadd.f32 %v307, %v423
  %v425 = vpop.f32.mrb[0].mxu0
  %v426 = vpop.f32.mrb[0].mxu0
  %v427 = vadd.f32 %v307, %v426
  %v428 = vpop.f32.mrb[0].mxu0
  %429 = vmatprep.mubr.bf16.mxu0 0
  %430 = vmatmul.mubr.bf16.gmra.mrb[0].mxu0 %v283
  %v431 = vpop.f32.mrb[0].mxu0
  %v432 = vadd.f32 %v307, %v431
  %v433 = vpop.f32.mrb[0].mxu0
  %v434 = vpop.f32.mrb[0].mxu0
  %v435 = vadd.f32 %v307, %v434
  %v436 = vpop.f32.mrb[0].mxu0
  %437 = vmatprep.mubr.bf16.mxu0 0
  %438 = vmatmul.mubr.bf16.gmra.mrb[0].mxu0 %v284
  %v439 = vpop.f32.mrb[0].mxu0
  %v440 = vadd.f32 %v307, %v439
  %v441 = vpop.f32.mrb[0].mxu0
  %v442 = vpop.f32.mrb[0].mxu0
  %v443 = vadd.f32 %v307, %v442
  %v444 = vpop.f32.mrb[0].mxu0
  %445 = vmatprep.mubr.bf16.mxu0 0
  %446 = vmatmul.mubr.bf16.gmra.mrb[0].mxu0 %v285
  %v447 = vpop.f32.mrb[0].mxu0
  %v448 = vadd.f32 %v307, %v447
  %v449 = vpop.f32.mrb[0].mxu0
  %v450 = vpop.f32.mrb[0].mxu0
  %v451 = vadd.f32 %v307, %v450
  %v452 = vpop.f32.mrb[0].mxu0
  %453 = vdwg.mxu0
  %v454 = vmax.f32 %v392, 0.0
  %v455 = vmax.f32 %v395, 0.0
  %v456 = vmax.f32 %v400, 0.0
  %v457 = vmax.f32 %v403, 0.0
  %v458 = vmax.f32 %v408, 0.0
  %v459 = vmax.f32 %v411, 0.0
  %v460 = vmax.f32 %v416, 0.0
  %v461 = vmax.f32 %v419, 0.0
  %v462 = vmax.f32 %v424, 0.0
  %v463 = vmax.f32 %v427, 0.0
  %v464 = vmax.f32 %v432, 0.0
  %v465 = vmax.f32 %v435, 0.0
  %v466 = vmax.f32 %v440, 0.0
  %v467 = vmax.f32 %v443, 0.0
  %v468 = vmax.f32 %v448, 0.0
  %v469 = vmax.f32 %v451, 0.0
  %v470 = vpack.c.bf16 %v455, %v454
  %v471 = vpack.c.bf16 %v457, %v456
  %v472 = vpack.c.bf16 %v459, %v458
  %v473 = vpack.c.bf16 %v461, %v460
  %v474 = vpack.c.bf16 %v463, %v462
  %v475 = vpack.c.bf16 %v465, %v464
  %v476 = vpack.c.bf16 %v467, %v466
  %v477 = vpack.c.bf16 %v469, %v468
  %v478 = vld [vmem:[%s6] sm:$0xf]
  %v479 = vld [vmem:[%s6 + $0x4] sm:$0xf]
  %v480 = vld [vmem:[%s6 + $0x8] sm:$0xf]
  %v481 = vld [vmem:[%s6 + $0xc] sm:$0xf]
  %v482 = vld [vmem:[%s6 + $0x10] sm:$0xf]
  %v483 = vld [vmem:[%s6 + $0x14] sm:$0xf]
  %v484 = vld [vmem:[%s6 + $0x18] sm:$0xf]
  %v485 = vld [vmem:[%s6 + $0x1c] sm:$0xf]
  %v486 = vld [vmem:[%s6 + $0x20] sm:$0xf]
  %v487 = vld [vmem:[%s6 + $0x24] sm:$0xf]
  %v488 = vld [vmem:[%s6 + $0x28] sm:$0xf]
  %v489 = vld [vmem:[%s6 + $0x2c] sm:$0xf]
  %v490 = vld [vmem:[%s6 + $0x30] sm:$0xf]
  %v491 = vld [vmem:[%s6 + $0x34] sm:$0xf]
  %v492 = vld [vmem:[%s6 + $0x38] sm:$0xf]
  %v493 = vld [vmem:[%s6 + $0x3c] sm:$0xf]
  %v494 = vld [vmem:[%s7] sm:$0x1]
  %v496 = vlaneseq
  %v497 = vshrl.u32 %v496, 7
  %v498 = vsub.s32 0, %v497
  %v499 = vrot.slane %v494, %v498
  %v517 = vunpack.c.l.b16 %v478
  %v518 = vunpack.c.l.b16 %v479
  %v519 = vunpack.c.l.b16 %v480
  %v520 = vunpack.c.l.b16 %v481
  %v521 = vunpack.c.l.b16 %v482
  %v522 = vunpack.c.l.b16 %v483
  %v523 = vunpack.c.l.b16 %v484
  %v524 = vunpack.c.l.b16 %v485
  %v525 = vunpack.c.l.b16 %v486
  %v526 = vunpack.c.l.b16 %v487
  %v527 = vunpack.c.l.b16 %v488
  %v528 = vunpack.c.l.b16 %v489
  %v529 = vunpack.c.l.b16 %v490
  %v530 = vunpack.c.l.b16 %v491
  %v531 = vunpack.c.l.b16 %v492
  %v532 = vunpack.c.l.b16 %v493
  %v533 = vpack.c.b16 %v518, %v517
  %v534 = vpack.c.b16 %v520, %v519
  %v535 = vpack.c.b16 %v522, %v521
  %v536 = vpack.c.b16 %v524, %v523
  %v537 = vpack.c.b16 %v526, %v525
  %v538 = vpack.c.b16 %v528, %v527
  %v539 = vpack.c.b16 %v530, %v529
  %v540 = vpack.c.b16 %v532, %v531
  %549 = vmatprep.subr.bf16.mxu0 0
  %550 = vmatpush1.bf16.msra.mxu0 %v533
  %551 = vmatprep.subr.bf16.mxu0 0
  %552 = vmatpush1.bf16.msra.mxu0 %v534
  %553 = vmatprep.subr.bf16.mxu0 0
  %554 = vmatpush1.bf16.msra.mxu0 %v535
  %555 = vmatprep.subr.bf16.mxu0 0
  %556 = vmatpush1.bf16.msra.mxu0 %v536
  %557 = vmatprep.subr.bf16.mxu0 0
  %558 = vmatpush1.bf16.msra.mxu0 %v537
  %559 = vmatprep.subr.bf16.mxu0 0
  %560 = vmatpush1.bf16.msra.mxu0 %v538
  %561 = vmatprep.subr.bf16.mxu0 0
  %562 = vmatpush1.bf16.msra.mxu0 %v539
  %563 = vmatprep.subr.bf16.mxu0 0
  %564 = vmatpush1.bf16.msra.mxu0 %v540
  %565 = vmatprep.subr.bf16.mxu0 0
  %566 = vmatpush1.bf16.msra.mxu0 0
  %567 = vmatprep.subr.bf16.mxu0 0
  %568 = vmatpush1.bf16.msra.mxu0 0
  %569 = vmatprep.subr.bf16.mxu0 0
  %570 = vmatpush1.bf16.msra.mxu0 0
  %571 = vmatprep.subr.bf16.mxu0 0
  %572 = vmatpush1.bf16.msra.mxu0 0
  %573 = vmatprep.subr.bf16.mxu0 0
  %574 = vmatpush1.bf16.msra.mxu0 0
  %575 = vmatprep.subr.bf16.mxu0 0
  %576 = vmatpush1.bf16.msra.mxu0 0
  %577 = vmatprep.subr.bf16.mxu0 0
  %578 = vmatpush1.bf16.msra.mxu0 0
  %579 = vmatprep.subr.bf16.mxu0 0
  %580 = vmatpush1.bf16.msra.mxu0 0
  %581 = vmatprep.mubr.bf16.mxu0 0
  %582 = vmatmul.mubr.bf16.gmra.mrb[0].mxu0 %v470
  %v583 = vpop.f32.mrb[0].mxu0
  %v584 = vadd.f32 %v499, %v583
  %v585 = vpop.f32.mrb[0].mxu0
  %v586 = vpop.f32.mrb[0].mxu0
  %v587 = vadd.f32 %v499, %v586
  %v588 = vpop.f32.mrb[0].mxu0
  %589 = vmatprep.mubr.bf16.mxu0 0
  %590 = vmatmul.mubr.bf16.gmra.mrb[0].mxu0 %v471
  %v591 = vpop.f32.mrb[0].mxu0
  %v592 = vadd.f32 %v499, %v591
  %v593 = vpop.f32.mrb[0].mxu0
  %v594 = vpop.f32.mrb[0].mxu0
  %v595 = vadd.f32 %v499, %v594
  %v596 = vpop.f32.mrb[0].mxu0
  %597 = vmatprep.mubr.bf16.mxu0 0
  %598 = vmatmul.mubr.bf16.gmra.mrb[0].mxu0 %v472
  %v599 = vpop.f32.mrb[0].mxu0
  %v600 = vadd.f32 %v499, %v599
  %v601 = vpop.f32.mrb[0].mxu0
  %v602 = vpop.f32.mrb[0].mxu0
  %v603 = vadd.f32 %v499, %v602
  %v604 = vpop.f32.mrb[0].mxu0
  %605 = vmatprep.mubr.bf16.mxu0 0
  %606 = vmatmul.mubr.bf16.gmra.mrb[0].mxu0 %v473
  %v607 = vpop.f32.mrb[0].mxu0
  %v608 = vadd.f32 %v499, %v607
  %v609 = vpop.f32.mrb[0].mxu0
  %v610 = vpop.f32.mrb[0].mxu0
  %v611 = vadd.f32 %v499, %v610
  %v612 = vpop.f32.mrb[0].mxu0
  %613 = vmatprep.mubr.bf16.mxu0 0
  %614 = vmatmul.mubr.bf16.gmra.mrb[0].mxu0 %v474
  %v615 = vpop.f32.mrb[0].mxu0
  %v616 = vadd.f32 %v499, %v615
  %v617 = vpop.f32.mrb[0].mxu0
  %v618 = vpop.f32.mrb[0].mxu0
  %v619 = vadd.f32 %v499, %v618
  %v620 = vpop.f32.mrb[0].mxu0
  %621 = vmatprep.mubr.bf16.mxu0 0
  %622 = vmatmul.mubr.bf16.gmra.mrb[0].mxu0 %v475
  %v623 = vpop.f32.mrb[0].mxu0
  %v624 = vadd.f32 %v499, %v623
  %v625 = vpop.f32.mrb[0].mxu0
  %v626 = vpop.f32.mrb[0].mxu0
  %v627 = vadd.f32 %v499, %v626
  %v628 = vpop.f32.mrb[0].mxu0
  %629 = vmatprep.mubr.bf16.mxu0 0
  %630 = vmatmul.mubr.bf16.gmra.mrb[0].mxu0 %v476
  %v631 = vpop.f32.mrb[0].mxu0
  %v632 = vadd.f32 %v499, %v631
  %v633 = vpop.f32.mrb[0].mxu0
  %v634 = vpop.f32.mrb[0].mxu0
  %v635 = vadd.f32 %v499, %v634
  %v636 = vpop.f32.mrb[0].mxu0
  %637 = vmatprep.mubr.bf16.mxu0 0
  %638 = vmatmul.mubr.bf16.gmra.mrb[0].mxu0 %v477
  %v639 = vpop.f32.mrb[0].mxu0
  %v640 = vadd.f32 %v499, %v639
  %v641 = vpop.f32.mrb[0].mxu0
  %v642 = vpop.f32.mrb[0].mxu0
  %v643 = vadd.f32 %v499, %v642
  %v644 = vpop.f32.mrb[0].mxu0
  %645 = vdwg.mxu0
  %v646 = vld [vmem:[%s0] sm:$0xff]
  %v647 = vld [vmem:[%s0 + $0x8] sm:$0xff]
  %v648 = vld [vmem:[%s0 + $0x10] sm:$0xff]
  %v649 = vld [vmem:[%s0 + $0x18] sm:$0xff]
  %v650 = vld [vmem:[%s0 + $0x20] sm:$0xff]
  %v651 = vld [vmem:[%s0 + $0x28] sm:$0xff]
  %v652 = vld [vmem:[%s0 + $0x30] sm:$0xff]
  %v653 = vld [vmem:[%s0 + $0x38] sm:$0xff]
  %v654 = vld [vmem:[%s0 + $0x40] sm:$0xff]
  %v655 = vld [vmem:[%s0 + $0x48] sm:$0xff]
  %v656 = vld [vmem:[%s0 + $0x50] sm:$0xff]
  %v657 = vld [vmem:[%s0 + $0x58] sm:$0xff]
  %v658 = vld [vmem:[%s0 + $0x60] sm:$0xff]
  %v659 = vld [vmem:[%s0 + $0x68] sm:$0xff]
  %v660 = vld [vmem:[%s0 + $0x70] sm:$0xff]
  %v661 = vld [vmem:[%s0 + $0x78] sm:$0xff]
  %v662 = vadd.f32 %v584, %v646
  %v663 = vadd.f32 %v587, %v647
  %v664 = vadd.f32 %v592, %v648
  %v665 = vadd.f32 %v595, %v649
  %v666 = vadd.f32 %v600, %v650
  %v667 = vadd.f32 %v603, %v651
  %v668 = vadd.f32 %v608, %v652
  %v669 = vadd.f32 %v611, %v653
  %v670 = vadd.f32 %v616, %v654
  %v671 = vadd.f32 %v619, %v655
  %v672 = vadd.f32 %v624, %v656
  %v673 = vadd.f32 %v627, %v657
  %v674 = vadd.f32 %v632, %v658
  %v675 = vadd.f32 %v635, %v659
  %v676 = vadd.f32 %v640, %v660
  %v677 = vadd.f32 %v643, %v661
  %vm678 = vcmask 64512
  %679 = vst.msk [vmem:[%s8] sm:$0xff] %vm678, %v662
  %680 = vst.msk [vmem:[%s8 + $0x8] sm:$0xff] %vm678, %v663
  %681 = vst.msk [vmem:[%s8 + $0x10] sm:$0xff] %vm678, %v664
  %682 = vst.msk [vmem:[%s8 + $0x18] sm:$0xff] %vm678, %v665
  %683 = vst.msk [vmem:[%s8 + $0x20] sm:$0xff] %vm678, %v666
  %684 = vst.msk [vmem:[%s8 + $0x28] sm:$0xff] %vm678, %v667
  %685 = vst.msk [vmem:[%s8 + $0x30] sm:$0xff] %vm678, %v668
  %686 = vst.msk [vmem:[%s8 + $0x38] sm:$0xff] %vm678, %v669
  %687 = vst.msk [vmem:[%s8 + $0x40] sm:$0xff] %vm678, %v670
  %688 = vst.msk [vmem:[%s8 + $0x48] sm:$0xff] %vm678, %v671
  %689 = vst.msk [vmem:[%s8 + $0x50] sm:$0xff] %vm678, %v672
  %690 = vst.msk [vmem:[%s8 + $0x58] sm:$0xff] %vm678, %v673
  %691 = vst.msk [vmem:[%s8 + $0x60] sm:$0xff] %vm678, %v674
  %692 = vst.msk [vmem:[%s8 + $0x68] sm:$0xff] %vm678, %v675
  %693 = vst.msk [vmem:[%s8 + $0x70] sm:$0xff] %vm678, %v676
  %694 = vst.msk [vmem:[%s8 + $0x78] sm:$0xff] %vm678, %v677
  // Predicated region
  $region34: #{tpu_custom_call.1} parent=0 // pred_check
    _
  $region35: #{tpu_custom_call.1} parent=0 // pred_check_branch
    %696 = sbr.rel (0) target = $region37
  $region36: #{tpu_custom_call.1} parent=0 // pred_region
    _
  $region37: #{tpu_custom_call.1} parent=0 // pred_fallthru
    _
  // Predicated region
  $region38: #{tpu_custom_call.1} parent=0 // pred_check
    _
  $region39: #{tpu_custom_call.1} parent=0 // pred_check_branch
    %698 = sbr.rel (0) target = $region41
  $region40: #{tpu_custom_call.1} parent=0 // pred_region
    _
  $region41: #{tpu_custom_call.1} parent=0 // pred_fallthru
    _

</llo_original>
